<compile_context>
chip_gen: v7x
topology: tpu7x:2x2x1
jax: 0.10.0
libtpu: 0.0.40
codegen_flags: <defaults>
</compile_context>

<pallas_src>
import math

import jax
import jax.numpy as jnp
from jax import lax
from jax.experimental import pallas as pl
from jax.experimental.pallas import tpu as pltpu


# ----------------------------------------------------------------------------
# Fused kernel: upsample + concat + (conv3x3 -> BN -> ReLU) x 2, one image/step
# ----------------------------------------------------------------------------
def _make_kernel(pad_y):
    def kernel(x2_ref, x1_ref, ay_ref, w1_ref, b1_ref, w2_ref, b2_ref, o_ref):
        """Per grid step (one image); all slabs are lane-dense (rows, W*C):
           x2_ref : (1, H, W*C2p)    bf16  skip connection (channels zero-padded)
           x1_ref : (1, H1, W1*C1p)  bf16  low-res input    (channels zero-padded)
           ay_ref : (2*H1, H1)       bf16  row-interp matrix (align_corners=True)
           w1_ref : (3*W*C2p + 3*W1*C1p, W*Op) bf16  conv1 weights with BN scale,
                    x-interp (diffX pad), SAME dx-pad and the implicit channel
                    concat all folded in; rows ordered to match xcat below.
           b1_ref : (1, W*Op) f32    folded BN bias, tiled along W
           w2_ref : (3*W*Op, W*Op) bf16  conv2 weights (BN scale folded)
           b2_ref : (1, W*Op) f32
           o_ref  : (1, H, W*Op) f32 (lane width multiple of 128 -> unmasked vst)
        """
        H = o_ref.shape[1]
        WO = o_ref.shape[2]
        h1o = ay_ref.shape[0]
        bf = jnp.bfloat16
        f32 = jnp.float32

        # ---- bilinear row-upsample (align_corners=True) as one MXU matmul;
        #      the column interpolation + diffX placement live in w1 already ----
        t = jnp.dot(ay_ref[...], x1_ref[0], preferred_element_type=f32)  # (h1o, W1*C1p)

        # ---- halo (+diffY) padded, lane-dense row slabs (VMEM resident) ----
        z2 = jnp.zeros((1, x2_ref.shape[2]), bf)
        x2p = jnp.concatenate([z2, x2_ref[0], z2], axis=0)               # (H+2, W*C2p)
        ztop = jnp.zeros((1 + pad_y, t.shape[1]), bf)
        zbot = jnp.zeros((H + 1 - pad_y - h1o, t.shape[1]), bf)
        x1p = jnp.concatenate([ztop, t.astype(bf), zbot], axis=0)        # (H+2, W1*C1p)

        # ---- conv1 + implicit concat + BN scale: ONE deep matmul over K =
        #      {3 dy taps} x {both channel groups}; then bias + ReLU ----
        xcat = jnp.concatenate(
            [x2p[0:H], x2p[1:H + 1], x2p[2:H + 2],
             x1p[0:H], x1p[1:H + 1], x1p[2:H + 2]], axis=-1)             # (H, K1)
        y1 = jnp.maximum(
            jnp.dot(xcat, w1_ref[...], preferred_element_type=f32) + b1_ref[...],
            0.0)                                                         # (H, W*Op)

        # ---- conv2 on the VMEM-resident intermediate (no HBM round trip) ----
        zo = jnp.zeros((1, WO), bf)
        y1p = jnp.concatenate([zo, y1.astype(bf), zo], axis=0)           # (H+2, W*Op)
        ycat = jnp.concatenate(
            [y1p[0:H], y1p[1:H + 1], y1p[2:H + 2]], axis=-1)             # (H, 3*W*Op)
        y2 = jnp.maximum(
            jnp.dot(ycat, w2_ref[...], preferred_element_type=f32) + b2_ref[...],
            0.0)                                                         # (H, W*Op)

        o_ref[...] = y2.reshape(o_ref.shape).astype(o_ref.dtype)
    return kernel


# ----------------------------------------------------------------------------
# Wrapper-side (trace-time) weight / interpolation matrix construction
# ----------------------------------------------------------------------------
def _interp_matrix(out_size, in_size):
    """1D bilinear interpolation matrix, PyTorch align_corners=True semantics."""
    if in_size == 1:
        return jnp.ones((out_size, 1), jnp.float32)
    src = jnp.arange(out_size, dtype=jnp.float32) * (in_size - 1) / (out_size - 1)
    i0 = jnp.floor(src).astype(jnp.int32)
    i1 = jnp.minimum(i0 + 1, in_size - 1)
    f = src - i0.astype(jnp.float32)
    oh0 = jax.nn.one_hot(i0, in_size, dtype=jnp.float32)
    oh1 = jax.nn.one_hot(i1, in_size, dtype=jnp.float32)
    return oh0 * (1.0 - f)[:, None] + oh1 * f[:, None]


def _band_matrices(w4, W):
    """w4: (3, 3, C, O) HWIO conv taps.  Returns (3, W*C, W*O) block-banded
    matrices (one per dy) so a SAME 3x3 conv along W becomes one matmul per dy:
      out[h, w*O+o] += sum_{src,c} in[h+dy-1, src*C+c] * M[dy][src*C+c, w*O+o].
    dx offsets and the zero-padding clamp at w=0 / w=W-1 are baked in."""
    _, _, C, O = w4.shape
    mats = []
    for dy in range(3):
        m = jnp.zeros((W, C, W, O), jnp.float32)
        for dx in range(3):
            # S[src, w] = 1  iff  src == w + dx - 1   (out-of-range rows dropped)
            S = jnp.eye(W, k=1 - dx, dtype=jnp.float32)
            m = m + S[:, None, :, None] * w4[dy, dx][None, :, None, :]
        mats.append(m.reshape(W * C, W * O))
    return jnp.stack(mats, axis=0)


def _pad_to_lane_multiple(c, width):
    """Smallest c' >= c such that (width * c') % 128 == 0."""
    step = 128 // math.gcd(width, 128)
    return -(-c // step) * step


def fold_bn(conv_bias, gamma, beta, mean, var, eps=1e-5):
    scale = gamma / jnp.sqrt(var + eps)
    bias = (conv_bias - mean) * scale + beta
    return scale, bias


# ----------------------------------------------------------------------------
# Forward: reproduces up.forward(x1, x2) with bilinear=True (eval-mode BN)
# ----------------------------------------------------------------------------
def up_forward(x1_nchw, x2_nchw, params):
    (w1, s1, b1), (w2, s2, b2) = params      # w: (3,3,Cin,O) HWIO, s/b: (O,)
    N, C1, H1, W1 = x1_nchw.shape
    _, C2, H, W = x2_nchw.shape
    O = w1.shape[-1]
    H1o, W1o = 2 * H1, 2 * W1
    dY, dX = H - H1o, W - W1o
    assert dY >= 0 and dX >= 0, "x2 spatial dims must be >= upsampled x1 dims"
    padY, padX = dY // 2, dX // 2
    bf = jnp.bfloat16
    f32 = jnp.float32

    # Channel padding so every slab / concat operand / output is 128-lane dense.
    C2p = _pad_to_lane_multiple(C2, W)
    C1p = _pad_to_lane_multiple(C1, W1)
    Op = _pad_to_lane_multiple(O, W)

    # Inputs -> NHWC -> channel-zero-padded, lane-dense (rows, W*C) bf16 slabs.
    x2n = jnp.transpose(x2_nchw, (0, 2, 3, 1))
    x1n = jnp.transpose(x1_nchw, (0, 2, 3, 1))
    x2f = jnp.pad(x2n, ((0, 0), (0, 0), (0, 0), (0, C2p - C2))
                  ).reshape(N, H, W * C2p).astype(bf)
    x1f = jnp.pad(x1n, ((0, 0), (0, 0), (0, 0), (0, C1p - C1))
                  ).reshape(N, H1, W1 * C1p).astype(bf)

    # Bilinear-upsample matrices; diffX zero-pad placement folded into B_x.
    A_y = _interp_matrix(H1o, H1)                                    # (H1o, H1)
    A_x = _interp_matrix(W1o, W1)                                    # (W1o, W1)
    A_xp = jnp.zeros((W, W1), f32).at[padX:padX + W1o].set(A_x)      # (W, W1)
    B_x = (A_xp.T[:, None, :, None] *
           jnp.eye(C1p, dtype=f32)[None, :, None, :]).reshape(W1 * C1p, W * C1p)

    # Conv weights: BN scale folded into output channels, channels zero-padded,
    # block-banded (SAME dx pad baked in), x-interp folded into the x1 half,
    # and the 3 dy taps stacked along K -> single matmul per conv in-kernel.
    w1s = w1 * s1[None, None, None, :]
    w2s = w2 * s2[None, None, None, :]
    w1_x2 = jnp.pad(w1s[:, :, :C2, :],
                    ((0, 0), (0, 0), (0, C2p - C2), (0, Op - O)))
    w1_x1 = jnp.pad(w1s[:, :, C2:, :],
                    ((0, 0), (0, 0), (0, C1p - C1), (0, Op - O)))
    w2p = jnp.pad(w2s, ((0, 0), (0, 0), (0, Op - O), (0, Op - O)))

    Wb2 = _band_matrices(w1_x2, W)                      # (3, W*C2p, W*Op)
    Wb1 = _band_matrices(w1_x1, W)                      # (3, W*C1p, W*Op)
    Wb1f = jnp.einsum('sk,dko->dso', B_x, Wb1)          # (3, W1*C1p, W*Op)
    Wb3 = _band_matrices(w2p, W)                        # (3, W*Op, W*Op)

    w1cat = jnp.concatenate([Wb2[0], Wb2[1], Wb2[2],
                             Wb1f[0], Wb1f[1], Wb1f[2]], axis=0)     # (K1, W*Op)
    w2cat = jnp.concatenate([Wb3[0], Wb3[1], Wb3[2]], axis=0)        # (K2, W*Op)

    b1f = jnp.tile(jnp.pad(b1, (0, Op - O)), W)[None].astype(f32)    # (1, W*Op)
    b2f = jnp.tile(jnp.pad(b2, (0, Op - O)), W)[None].astype(f32)

    K1, K2, WO = w1cat.shape[0], w2cat.shape[0], W * Op

    out_flat = pl.pallas_call(
        _make_kernel(padY),
        out_shape=jax.ShapeDtypeStruct((N, H, WO), f32),
        grid_spec=pltpu.PrefetchScalarGridSpec(
            num_scalar_prefetch=0,
            grid=(N,),  # one image per step; "parallel" -> both TCs busy on v7x
            in_specs=[
                pl.BlockSpec((1, H, W * C2p), lambda i: (i, 0, 0)),
                pl.BlockSpec((1, H1, W1 * C1p), lambda i: (i, 0, 0)),
                pl.BlockSpec((H1o, H1), lambda i: (0, 0)),
                pl.BlockSpec((K1, WO), lambda i: (0, 0)),
                pl.BlockSpec((1, WO), lambda i: (0, 0)),
                pl.BlockSpec((K2, WO), lambda i: (0, 0)),
                pl.BlockSpec((1, WO), lambda i: (0, 0)),
            ],
            out_specs=pl.BlockSpec((1, H, WO), lambda i: (i, 0, 0)),
        ),
        compiler_params=pltpu.CompilerParams(
            dimension_semantics=("parallel",)),
    )(x2f, x1f, A_y.astype(bf), w1cat.astype(bf), b1f, w2cat.astype(bf), b2f)

    # Un-flatten lanes, drop the zero output-channel padding, back to NCHW.
    out = out_flat.reshape(N, H, W, Op)[..., :O]
    return jnp.transpose(out, (0, 3, 1, 2))


# ----------------------------------------------------------------------------
# Pure-JAX f32 reference (PyTorch semantics) for a silent sanity check
# ----------------------------------------------------------------------------
def bilinear_up2_align_corners(x):  # x: (N,H,W,C)
    n, h, w, c = x.shape
    ho, wo = 2 * h, 2 * w

    def coords(out_size, in_size):
        if in_size == 1:
            z = jnp.zeros((out_size,))
            return z, z.astype(jnp.int32), z.astype(jnp.int32)
        src = jnp.arange(out_size, dtype=jnp.float32) * (in_size - 1) / (out_size - 1)
        i0 = jnp.floor(src).astype(jnp.int32)
        i1 = jnp.minimum(i0 + 1, in_size - 1)
        return src - i0.astype(jnp.float32), i0, i1

    fy, y0, y1 = coords(ho, h)
    fx, x0, x1 = coords(wo, w)
    rows = (x[:, y0, :, :] * (1.0 - fy)[None, :, None, None]
            + x[:, y1, :, :] * fy[None, :, None, None])
    return (rows[:, :, x0, :] * (1.0 - fx)[None, None, :, None]
            + rows[:, :, x1, :] * fx[None, None, :, None])


def _ref_conv_bn_relu(x_nhwc, w_hwio, scale, bias):
    y = lax.conv_general_dilated(
        x_nhwc, w_hwio, window_strides=(1, 1), padding="SAME",
        dimension_numbers=("NHWC", "HWIO", "NHWC"),
        precision=lax.Precision.HIGHEST)
    return jnp.maximum(y * scale + bias, 0.0)


def _ref_up_forward(x1_nchw, x2_nchw, params):
    x1 = jnp.transpose(x1_nchw, (0, 2, 3, 1))
    x2 = jnp.transpose(x2_nchw, (0, 2, 3, 1))
    x1 = bilinear_up2_align_corners(x1)
    dy = x2.shape[1] - x1.shape[1]
    dx = x2.shape[2] - x1.shape[2]
    x1 = jnp.pad(x1, ((0, 0), (dy // 2, dy - dy // 2),
                      (dx // 2, dx - dx // 2), (0, 0)))
    x = jnp.concatenate([x2, x1], axis=-1)  # torch.cat([x2, x1], dim=1)
    (w1, s1, b1), (w2, s2, b2) = params
    x = _ref_conv_bn_relu(x, w1, s1, b1)
    x = _ref_conv_bn_relu(x, w2, s2, b2)
    return jnp.transpose(x, (0, 3, 1, 2))


# ----------------------------------------------------------------------------
# Main
# ----------------------------------------------------------------------------
if __name__ == "__main__":
    key = jax.random.PRNGKey(0)
    N, in_ch, out_ch = 2, 8, 4
    c_half = in_ch // 2
    H1 = W1 = 8      # x1 spatial (low-res)
    H2 = W2 = 16     # x2 spatial (skip connection)

    ks = jax.random.split(key, 16)

    # inputs (NCHW, matching the PyTorch convention)
    x1 = jax.random.normal(ks[0], (N, c_half, H1, W1), jnp.float32)
    x2 = jax.random.normal(ks[1], (N, in_ch - c_half, H2, W2), jnp.float32)

    def make_layer(k, cin, cout):
        kw, kb, kg, kbe, km, kv = jax.random.split(k, 6)
        w = 0.1 * jax.random.normal(kw, (3, 3, cin, cout), jnp.float32)  # HWIO
        b = 0.1 * jax.random.normal(kb, (cout,), jnp.float32)
        gamma = 1.0 + 0.1 * jax.random.normal(kg, (cout,), jnp.float32)
        beta = 0.1 * jax.random.normal(kbe, (cout,), jnp.float32)
        mean = 0.1 * jax.random.normal(km, (cout,), jnp.float32)
        var = jnp.abs(1.0 + 0.1 * jax.random.normal(kv, (cout,), jnp.float32))
        scale, bias = fold_bn(b, gamma, beta, mean, var)
        return (w, scale, bias)

    layer1 = make_layer(ks[2], in_ch, out_ch)    # double_conv conv1: in_ch -> out_ch
    layer2 = make_layer(ks[3], out_ch, out_ch)   # double_conv conv2: out_ch -> out_ch
    params = (layer1, layer2)

    out = up_forward(x1, x2, params)
    out = jax.block_until_ready(out)
    assert out.shape == (N, out_ch, H2, W2), out.shape

    ref = jax.block_until_ready(_ref_up_forward(x1, x2, params))
    # bf16 MXU operands (f32 accumulation) vs f32 reference -> loose tolerance.
    assert jnp.allclose(out, ref, rtol=3e-2, atol=3e-2), (
        float(jnp.max(jnp.abs(out - ref))))

    print("KERNEL_OK")
</pallas_src>

<mosaic_0001>
module attributes {stable_mosaic.version = 11 : i64} {
  func.func @kernel(%arg0: i32, %arg1: memref<1x16x128xbf16, #tpu.memory_space<vmem>>, %arg2: memref<1x8x128xbf16, #tpu.memory_space<vmem>>, %arg3: memref<16x8xbf16, #tpu.memory_space<vmem>>, %arg4: memref<768x128xbf16, #tpu.memory_space<vmem>>, %arg5: memref<1x128xf32, #tpu.memory_space<vmem>>, %arg6: memref<384x128xbf16, #tpu.memory_space<vmem>>, %arg7: memref<1x128xf32, #tpu.memory_space<vmem>>, %arg8: memref<1x16x128xf32, #tpu.memory_space<vmem>>) attributes {dimension_semantics = [#tpu.dimension_semantics<parallel>], iteration_bounds = array<i64: 2>, scalar_prefetch = 0 : i64, scratch_operands = 0 : i64, tpu.core_type = #tpu.core_type<tc>, window_params = [{transform_indices = @transform_0, window_bounds = array<i64: 1, 16, 128>}, {transform_indices = @transform_1, window_bounds = array<i64: 1, 8, 128>}, {pipeline_mode = #tpu.pipeline_mode<synchronous>, transform_indices = @transform_2, window_bounds = array<i64: 16, 8>}, {pipeline_mode = #tpu.pipeline_mode<synchronous>, transform_indices = @transform_3, window_bounds = array<i64: 768, 128>}, {pipeline_mode = #tpu.pipeline_mode<synchronous>, transform_indices = @transform_4, window_bounds = array<i64: 1, 128>}, {pipeline_mode = #tpu.pipeline_mode<synchronous>, transform_indices = @transform_5, window_bounds = array<i64: 384, 128>}, {pipeline_mode = #tpu.pipeline_mode<synchronous>, transform_indices = @transform_6, window_bounds = array<i64: 1, 128>}, {transform_indices = @transform_7, window_bounds = array<i64: 1, 16, 128>}]} {
    %c0 = arith.constant 0 : index
    %c0_0 = arith.constant 0 : index
    %0 = vector.load %arg3[%c0, %c0_0] : memref<16x8xbf16, #tpu.memory_space<vmem>>, vector<16x8xbf16>
    %c0_1 = arith.constant 0 : index
    %c0_2 = arith.constant 0 : index
    %c0_3 = arith.constant 0 : index
    %1 = vector.load %arg2[%c0_1, %c0_2, %c0_3] : memref<1x8x128xbf16, #tpu.memory_space<vmem>>, vector<1x8x128xbf16>
    %2 = vector.shape_cast %1 : vector<1x8x128xbf16> to vector<8x128xbf16>
    %cst = arith.constant dense<0.000000e+00> : vector<16x128xf32>
    %3 = tpu.matmul %0, %2, %cst {dimension_numbers = #tpu.dot_dimension_numbers<[1], [0], [0], [1], [0, 0, 1, 1], [], []>} : vector<16x8xbf16>, vector<8x128xbf16>, vector<16x128xf32> -> vector<16x128xf32>
    %cst_4 = arith.constant 0.000000e+00 : bf16
    %4 = vector.broadcast %cst_4 : bf16 to vector<1x128xbf16>
    %c0_5 = arith.constant 0 : index
    %c0_6 = arith.constant 0 : index
    %c0_7 = arith.constant 0 : index
    %5 = vector.load %arg1[%c0_5, %c0_6, %c0_7] : memref<1x16x128xbf16, #tpu.memory_space<vmem>>, vector<1x16x128xbf16>
    %6 = vector.shape_cast %5 : vector<1x16x128xbf16> to vector<16x128xbf16>
    %7 = tpu.concatenate %4, %6, %4 in 0 : vector<1x128xbf16>, vector<16x128xbf16>, vector<1x128xbf16> -> vector<18x128xbf16>
    %cst_8 = arith.constant 0.000000e+00 : bf16
    %8 = vector.broadcast %cst_8 : bf16 to vector<1x128xbf16>
    %cst_9 = arith.constant 0.000000e+00 : bf16
    %9 = vector.broadcast %cst_9 : bf16 to vector<1x128xbf16>
    %10 = arith.truncf %3 : vector<16x128xf32> to vector<16x128xbf16>
    %11 = tpu.concatenate %8, %10, %9 in 0 : vector<1x128xbf16>, vector<16x128xbf16>, vector<1x128xbf16> -> vector<18x128xbf16>
    %12 = vector.extract_strided_slice %7 {offsets = [0, 0], sizes = [16, 128], strides = [1, 1]} : vector<18x128xbf16> to vector<16x128xbf16>
    %13 = vector.extract_strided_slice %7 {offsets = [1, 0], sizes = [16, 128], strides = [1, 1]} : vector<18x128xbf16> to vector<16x128xbf16>
    %14 = vector.extract_strided_slice %7 {offsets = [2, 0], sizes = [16, 128], strides = [1, 1]} : vector<18x128xbf16> to vector<16x128xbf16>
    %15 = vector.extract_strided_slice %11 {offsets = [0, 0], sizes = [16, 128], strides = [1, 1]} : vector<18x128xbf16> to vector<16x128xbf16>
    %16 = vector.extract_strided_slice %11 {offsets = [1, 0], sizes = [16, 128], strides = [1, 1]} : vector<18x128xbf16> to vector<16x128xbf16>
    %17 = vector.extract_strided_slice %11 {offsets = [2, 0], sizes = [16, 128], strides = [1, 1]} : vector<18x128xbf16> to vector<16x128xbf16>
    %18 = tpu.concatenate %12, %13, %14, %15, %16, %17 in 1 : vector<16x128xbf16>, vector<16x128xbf16>, vector<16x128xbf16>, vector<16x128xbf16>, vector<16x128xbf16>, vector<16x128xbf16> -> vector<16x768xbf16>
    %c0_10 = arith.constant 0 : index
    %c0_11 = arith.constant 0 : index
    %19 = vector.load %arg4[%c0_10, %c0_11] : memref<768x128xbf16, #tpu.memory_space<vmem>>, vector<768x128xbf16>
    %cst_12 = arith.constant dense<0.000000e+00> : vector<16x128xf32>
    %20 = tpu.matmul %18, %19, %cst_12 {dimension_numbers = #tpu.dot_dimension_numbers<[1], [0], [0], [1], [0, 0, 1, 1], [], []>} : vector<16x768xbf16>, vector<768x128xbf16>, vector<16x128xf32> -> vector<16x128xf32>
    %c0_13 = arith.constant 0 : index
    %c0_14 = arith.constant 0 : index
    %21 = vector.load %arg5[%c0_13, %c0_14] : memref<1x128xf32, #tpu.memory_space<vmem>>, vector<1x128xf32>
    %22 = vector.broadcast %21 : vector<1x128xf32> to vector<16x128xf32>
    %23 = arith.addf %20, %22 : vector<16x128xf32>
    %cst_15 = arith.constant 0.000000e+00 : f32
    %24 = vector.broadcast %cst_15 : f32 to vector<16x128xf32>
    %25 = arith.maximumf %23, %24 : vector<16x128xf32>
    %cst_16 = arith.constant 0.000000e+00 : bf16
    %26 = vector.broadcast %cst_16 : bf16 to vector<1x128xbf16>
    %27 = arith.truncf %25 : vector<16x128xf32> to vector<16x128xbf16>
    %28 = tpu.concatenate %26, %27, %26 in 0 : vector<1x128xbf16>, vector<16x128xbf16>, vector<1x128xbf16> -> vector<18x128xbf16>
    %29 = vector.extract_strided_slice %28 {offsets = [0, 0], sizes = [16, 128], strides = [1, 1]} : vector<18x128xbf16> to vector<16x128xbf16>
    %30 = vector.extract_strided_slice %28 {offsets = [1, 0], sizes = [16, 128], strides = [1, 1]} : vector<18x128xbf16> to vector<16x128xbf16>
    %31 = vector.extract_strided_slice %28 {offsets = [2, 0], sizes = [16, 128], strides = [1, 1]} : vector<18x128xbf16> to vector<16x128xbf16>
    %32 = tpu.concatenate %29, %30, %31 in 1 : vector<16x128xbf16>, vector<16x128xbf16>, vector<16x128xbf16> -> vector<16x384xbf16>
    %c0_17 = arith.constant 0 : index
    %c0_18 = arith.constant 0 : index
    %33 = vector.load %arg6[%c0_17, %c0_18] : memref<384x128xbf16, #tpu.memory_space<vmem>>, vector<384x128xbf16>
    %cst_19 = arith.constant dense<0.000000e+00> : vector<16x128xf32>
    %34 = tpu.matmul %32, %33, %cst_19 {dimension_numbers = #tpu.dot_dimension_numbers<[1], [0], [0], [1], [0, 0, 1, 1], [], []>} : vector<16x384xbf16>, vector<384x128xbf16>, vector<16x128xf32> -> vector<16x128xf32>
    %c0_20 = arith.constant 0 : index
    %c0_21 = arith.constant 0 : index
    %35 = vector.load %arg7[%c0_20, %c0_21] : memref<1x128xf32, #tpu.memory_space<vmem>>, vector<1x128xf32>
    %36 = vector.broadcast %35 : vector<1x128xf32> to vector<16x128xf32>
    %37 = arith.addf %34, %36 : vector<16x128xf32>
    %cst_22 = arith.constant 0.000000e+00 : f32
    %38 = vector.broadcast %cst_22 : f32 to vector<16x128xf32>
    %39 = arith.maximumf %37, %38 : vector<16x128xf32>
    %40 = vector.shape_cast %39 : vector<16x128xf32> to vector<1x16x128xf32>
    %c0_23 = arith.constant 0 : index
    %c0_24 = arith.constant 0 : index
    %c0_25 = arith.constant 0 : index
    %41 = vector.load %arg8[%c0_23, %c0_24, %c0_25] : memref<1x16x128xf32, #tpu.memory_space<vmem>>, vector<1x16x128xf32>
    tpu.vector_store %arg8[%c0_23, %c0_24, %c0_25], %40 {strides = array<i32>} : memref<1x16x128xf32, #tpu.memory_space<vmem>>, vector<1x16x128xf32>,
    return
  }
  func.func @transform_0(%arg0: i32) -> (i32, i32, i32) {
    %c0_i32 = arith.constant 0 : i32
    %c0_i32_0 = arith.constant 0 : i32
    %c0_i32_1 = arith.constant 0 : i32
    return %arg0, %c0_i32, %c0_i32_0 : i32, i32, i32
  }
  func.func @transform_1(%arg0: i32) -> (i32, i32, i32) {
    %c0_i32 = arith.constant 0 : i32
    %c0_i32_0 = arith.constant 0 : i32
    %c0_i32_1 = arith.constant 0 : i32
    return %arg0, %c0_i32, %c0_i32_0 : i32, i32, i32
  }
  func.func @transform_2(%arg0: i32) -> (i32, i32) {
    %c0_i32 = arith.constant 0 : i32
    %c0_i32_0 = arith.constant 0 : i32
    %c0_i32_1 = arith.constant 0 : i32
    return %c0_i32, %c0_i32_0 : i32, i32
  }
  func.func @transform_3(%arg0: i32) -> (i32, i32) {
    %c0_i32 = arith.constant 0 : i32
    %c0_i32_0 = arith.constant 0 : i32
    %c0_i32_1 = arith.constant 0 : i32
    return %c0_i32, %c0_i32_0 : i32, i32
  }
  func.func @transform_4(%arg0: i32) -> (i32, i32) {
    %c0_i32 = arith.constant 0 : i32
    %c0_i32_0 = arith.constant 0 : i32
    %c0_i32_1 = arith.constant 0 : i32
    return %c0_i32, %c0_i32_0 : i32, i32
  }
  func.func @transform_5(%arg0: i32) -> (i32, i32) {
    %c0_i32 = arith.constant 0 : i32
    %c0_i32_0 = arith.constant 0 : i32
    %c0_i32_1 = arith.constant 0 : i32
    return %c0_i32, %c0_i32_0 : i32, i32
  }
  func.func @transform_6(%arg0: i32) -> (i32, i32) {
    %c0_i32 = arith.constant 0 : i32
    %c0_i32_0 = arith.constant 0 : i32
    %c0_i32_1 = arith.constant 0 : i32
    return %c0_i32, %c0_i32_0 : i32, i32
  }
  func.func @transform_7(%arg0: i32) -> (i32, i32, i32) {
    %c0_i32 = arith.constant 0 : i32
    %c0_i32_0 = arith.constant 0 : i32
    %c0_i32_1 = arith.constant 0 : i32
    return %arg0, %c0_i32, %c0_i32_0 : i32, i32, i32
  }
}

</mosaic_0001>

<llo_original>
// kernel: tpu_custom_call.1
$region0: #{tpu_custom_call.1}
  #allocation0 [shape = 'u32[]', space=smem, size = 0x4, offset = 0x4, fixed_abs, tag = 'smem constant byte address 0x4 - core index']
  #allocation1 [shape = 'u32[144,128]{1,0:T(1,128)}', space=vmem, size = 0x12000, scoped, tag = 'internal scratch']
  %s0 = inlined_call_operand.hbm [shape: bf16[2,16,128], index: 0, kind: input, shape index: {}]
  %s1 = inlined_call_operand.vmem [shape: bf16[2,8,128], index: 1, kind: input, shape index: {}]
  %s2 = inlined_call_operand.vmem [shape: bf16[16,8], index: 2, kind: input, shape index: {}]
  %s3 = inlined_call_operand.hbm [shape: bf16[768,128], index: 3, kind: input, shape index: {}]
  %s4 = inlined_call_operand.vmem [shape: f32[1,128], index: 4, kind: input, shape index: {}]
  %s5 = inlined_call_operand.hbm [shape: bf16[384,128], index: 5, kind: input, shape index: {}]
  %s6 = inlined_call_operand.vmem [shape: f32[1,128], index: 6, kind: input, shape index: {}]
  %s7 = inlined_call_operand.hbm [shape: f32[2,16,128], index: 7, kind: output, shape index: {}]
  %s8 = sld [smem:[#allocation0]]
  $region73: #{tpu_custom_call.1} parent=0
    _
  %s10 = ssub.s32 1, %s8
  %s11 = scalar_select 0, %s10, %s8
  $region1: #{tpu_custom_call.1} parent=0
    #allocation2 [shape = 'u8[8192]{0}', space=vmem, size = 0x2000, scoped, tag = 'input window, operand 0']
    #allocation3 [shape = 's32[2]{0}', space=sflag, size = 0x8, scoped, tag = 'scoped memory for tpu_custom_call.1']
    #allocation4 [shape = 's32[2]{0}', space=sflag, size = 0x8, scoped, tag = 'scoped memory for tpu_custom_call.1']
    #allocation5 [shape = 'u8[196608]{0}', space=vmem, size = 0x30000, scoped, tag = 'input window, operand 3, single buffered']
    #allocation6 [shape = 's32[1]{0}', space=sflag, size = 0x4, scoped, tag = 'scoped memory for tpu_custom_call.1']
    #allocation7 [shape = 'u8[98304]{0}', space=vmem, size = 0x18000, scoped, tag = 'input window, operand 5, single buffered']
    #allocation8 [shape = 'u8[16384]{0}', space=vmem, size = 0x4000, scoped, tag = 'output window, operand 0']
    %12 = vsyncpa [#allocation3], 0
    %s13 = scalar_lea.sflag [#allocation3], 1
    %14 = vsyncpa %s13, 0
    %15 = vsyncpa [#allocation6], 0
    %16 = vsyncpa [#allocation4], 0
    %s17 = scalar_lea.sflag [#allocation4], 1
    %18 = vsyncpa %s17, 0
    loop: start=0, step=1, limit=4
    $region2: #{tpu_custom_call.1} parent=1 // loop_pre_header
      _
    $region3: #{tpu_custom_call.1} parent=1 // loop_header
      %s20 = sphi 0, %s24
      %p21 = scmp.ge.s32.totalorder %s20, 4
      %s30 = sphi 0, %s32
      %s33 = sphi 0, %s30
      %s34 = sphi 0, %s33
      %s50 = sphi 0, %s34
      %s56 = sphi 0, %s58
      %s59 = sphi 0, %s56
      %s60 = sphi 0, %s59
      %s76 = sphi 0, %s60
      %s80 = sphi 0, %s80
      %s82 = sphi 0, %s80
      %s83 = sphi 0, %s82
      %s97 = sphi 0, %s83
      %s101 = sphi 0, %s101
      %s103 = sphi 0, %s101
      %s104 = sphi 0, %s103
      %s118 = sphi 0, %s104
      %s122 = sphi 0, %s122
      %s124 = sphi 0, %s122
      %s125 = sphi 0, %s124
      %s139 = sphi 0, %s125
      %s143 = sphi 0, %s143
      %s145 = sphi 0, %s143
      %s146 = sphi 0, %s145
      %s160 = sphi 0, %s146
      %s164 = sphi 0, %s164
      %s166 = sphi 0, %s164
      %s167 = sphi 0, %s166
      %s181 = sphi 0, %s167
      %s187 = sphi 0, %s189
      %s190 = sphi 0, %s187
      %s191 = sphi 0, %s190
      %s207 = sphi 0, %s191
    $region4: #{tpu_custom_call.1} parent=1 // loop_header_branch
      %23 = sbr.rel (%p21) target = $region8
    $region5: #{tpu_custom_call.1} parent=1 // loop_body
      %s25 = ssub.s32 %s20, 1
      %s26 = ssub.s32 %s20, 2
      %s27 = sadd.s32 %s20, 1
      %s28 = ssub.s32 %s20, %s27
      %p29 = scmp.eq.s32.totalorder %s28, 0
      %s31 = sadd.s32 %s30, 1
      %s32 = scalar_select %p29, %s30, %s31
      %p35 = pneg %p29
      %p36 = scmp.eq.s32.totalorder %s20, 1
      %p37 = por %p35, %p36
      %p38 = scmp.ne.s32.totalorder %s30, %s33
      %p39 = scmp.eq.s32.totalorder %s20, 0
      %p40 = por %p38, %p39
      %p41 = scmp.ne.s32.totalorder %s30, %s33
      %p42 = scmp.eq.s32.totalorder %s25, 1
      %p43 = por %p41, %p42
      %p44 = scmp.ne.s32.totalorder %s33, %s34
      %p45 = scmp.eq.s32.totalorder %s25, 0
      %p46 = por %p44, %p45
      %p47 = scmp.ne.s32.totalorder %s33, %s34
      %p48 = scmp.eq.s32.totalorder %s26, 1
      %p49 = por %p47, %p48
      %p51 = scmp.ne.s32.totalorder %s34, %s50
      %p52 = scmp.eq.s32.totalorder %s26, 0
      %p53 = por %p51, %p52
      %s54 = ssub.s32 %s20, %s27
      %p55 = scmp.eq.s32.totalorder %s54, 0
      %s57 = sadd.s32 %s56, 1
      %s58 = scalar_select %p55, %s56, %s57
      %p61 = pneg %p55
      %p62 = scmp.eq.s32.totalorder %s20, 1
      %p63 = por %p61, %p62
      %p64 = scmp.ne.s32.totalorder %s56, %s59
      %p65 = scmp.eq.s32.totalorder %s20, 0
      %p66 = por %p64, %p65
      %p67 = scmp.ne.s32.totalorder %s56, %s59
      %p68 = scmp.eq.s32.totalorder %s25, 1
      %p69 = por %p67, %p68
      %p70 = scmp.ne.s32.totalorder %s59, %s60
      %p71 = scmp.eq.s32.totalorder %s25, 0
      %p72 = por %p70, %p71
      %p73 = scmp.ne.s32.totalorder %s59, %s60
      %p74 = scmp.eq.s32.totalorder %s26, 1
      %p75 = por %p73, %p74
      %p77 = scmp.ne.s32.totalorder %s60, %s76
      %p78 = scmp.eq.s32.totalorder %s26, 0
      %p79 = por %p77, %p78
      %s81 = sadd.s32 %s80, 1
      %p84 = scmp.eq.s32.totalorder %s20, 1
      %p85 = scmp.ne.s32.totalorder %s80, %s82
      %p86 = scmp.eq.s32.totalorder %s20, 0
      %p87 = por %p85, %p86
      %p88 = scmp.ne.s32.totalorder %s80, %s82
      %p89 = scmp.eq.s32.totalorder %s25, 1
      %p90 = por %p88, %p89
      %p91 = scmp.ne.s32.totalorder %s82, %s83
      %p92 = scmp.eq.s32.totalorder %s25, 0
      %p93 = por %p91, %p92
      %p94 = scmp.ne.s32.totalorder %s82, %s83
      %p95 = scmp.eq.s32.totalorder %s26, 1
      %p96 = por %p94, %p95
      %p98 = scmp.ne.s32.totalorder %s83, %s97
      %p99 = scmp.eq.s32.totalorder %s26, 0
      %p100 = por %p98, %p99
      %s102 = sadd.s32 %s101, 1
      %p105 = scmp.eq.s32.totalorder %s20, 1
      %p106 = scmp.ne.s32.totalorder %s101, %s103
      %p107 = scmp.eq.s32.totalorder %s20, 0
      %p108 = por %p106, %p107
      %p109 = scmp.ne.s32.totalorder %s101, %s103
      %p110 = scmp.eq.s32.totalorder %s25, 1
      %p111 = por %p109, %p110
      %p112 = scmp.ne.s32.totalorder %s103, %s104
      %p113 = scmp.eq.s32.totalorder %s25, 0
      %p114 = por %p112, %p113
      %p115 = scmp.ne.s32.totalorder %s103, %s104
      %p116 = scmp.eq.s32.totalorder %s26, 1
      %p117 = por %p115, %p116
      %p119 = scmp.ne.s32.totalorder %s104, %s118
      %p120 = scmp.eq.s32.totalorder %s26, 0
      %p121 = por %p119, %p120
      %s123 = sadd.s32 %s122, 1
      %p126 = scmp.eq.s32.totalorder %s20, 1
      %p127 = scmp.ne.s32.totalorder %s122, %s124
      %p128 = scmp.eq.s32.totalorder %s20, 0
      %p129 = por %p127, %p128
      %p130 = scmp.ne.s32.totalorder %s122, %s124
      %p131 = scmp.eq.s32.totalorder %s25, 1
      %p132 = por %p130, %p131
      %p133 = scmp.ne.s32.totalorder %s124, %s125
      %p134 = scmp.eq.s32.totalorder %s25, 0
      %p135 = por %p133, %p134
      %p136 = scmp.ne.s32.totalorder %s124, %s125
      %p137 = scmp.eq.s32.totalorder %s26, 1
      %p138 = por %p136, %p137
      %p140 = scmp.ne.s32.totalorder %s125, %s139
      %p141 = scmp.eq.s32.totalorder %s26, 0
      %p142 = por %p140, %p141
      %s144 = sadd.s32 %s143, 1
      %p147 = scmp.eq.s32.totalorder %s20, 1
      %p148 = scmp.ne.s32.totalorder %s143, %s145
      %p149 = scmp.eq.s32.totalorder %s20, 0
      %p150 = por %p148, %p149
      %p151 = scmp.ne.s32.totalorder %s143, %s145
      %p152 = scmp.eq.s32.totalorder %s25, 1
      %p153 = por %p151, %p152
      %p154 = scmp.ne.s32.totalorder %s145, %s146
      %p155 = scmp.eq.s32.totalorder %s25, 0
      %p156 = por %p154, %p155
      %p157 = scmp.ne.s32.totalorder %s145, %s146
      %p158 = scmp.eq.s32.totalorder %s26, 1
      %p159 = por %p157, %p158
      %p161 = scmp.ne.s32.totalorder %s146, %s160
      %p162 = scmp.eq.s32.totalorder %s26, 0
      %p163 = por %p161, %p162
      %s165 = sadd.s32 %s164, 1
      %p168 = scmp.eq.s32.totalorder %s20, 1
      %p169 = scmp.ne.s32.totalorder %s164, %s166
      %p170 = scmp.eq.s32.totalorder %s20, 0
      %p171 = por %p169, %p170
      %p172 = scmp.ne.s32.totalorder %s164, %s166
      %p173 = scmp.eq.s32.totalorder %s25, 1
      %p174 = por %p172, %p173
      %p175 = scmp.ne.s32.totalorder %s166, %s167
      %p176 = scmp.eq.s32.totalorder %s25, 0
      %p177 = por %p175, %p176
      %p178 = scmp.ne.s32.totalorder %s166, %s167
      %p179 = scmp.eq.s32.totalorder %s26, 1
      %p180 = por %p178, %p179
      %p182 = scmp.ne.s32.totalorder %s167, %s181
      %p183 = scmp.eq.s32.totalorder %s26, 0
      %p184 = por %p182, %p183
      %s185 = ssub.s32 %s20, %s27
      %p186 = scmp.eq.s32.totalorder %s185, 0
      %s188 = sadd.s32 %s187, 1
      %s189 = scalar_select %p186, %s187, %s188
      %p192 = pneg %p186
      %p193 = scmp.eq.s32.totalorder %s20, 1
      %p194 = por %p192, %p193
      %p195 = scmp.ne.s32.totalorder %s187, %s190
      %p196 = scmp.eq.s32.totalorder %s20, 0
      %p197 = por %p195, %p196
      %p198 = scmp.ne.s32.totalorder %s187, %s190
      %p199 = scmp.eq.s32.totalorder %s25, 1
      %p200 = por %p198, %p199
      %p201 = scmp.ne.s32.totalorder %s190, %s191
      %p202 = scmp.eq.s32.totalorder %s25, 0
      %p203 = por %p201, %p202
      %p204 = scmp.ne.s32.totalorder %s190, %s191
      %p205 = scmp.eq.s32.totalorder %s26, 1
      %p206 = por %p204, %p205
      %p208 = scmp.ne.s32.totalorder %s191, %s207
      %p209 = scmp.eq.s32.totalorder %s26, 0
      %p210 = por %p208, %p209
      %p211 = scmp.le.s32.totalorder 1, %s20
      %p212 = scmp.lt.s32.totalorder %s20, 3
      %p213 = pnand %p211, %p212
      %p214 = pneg %p213
      // Predicated region
      $region9: #{tpu_custom_call.1} parent=5 // pred_check
        _
      $region10: #{tpu_custom_call.1} parent=5 // pred_check_branch
        %216 = sbr.rel (%p213) target = $region12
      $region11: #{tpu_custom_call.1} parent=5 // pred_region
        %s217 = ssub.s32 %s20, 1
        // Predicated region
        $region13: #{tpu_custom_call.1} parent=11 // pred_check
          %p218 = pneg %p93
        $region14: #{tpu_custom_call.1} parent=11 // pred_check_branch
          %220 = sbr.rel (%p218) target = $region16
        $region15: #{tpu_custom_call.1} parent=11 // pred_region
          _
        $region16: #{tpu_custom_call.1} parent=11 // pred_fallthru
          _
        // Predicated region
        $region17: #{tpu_custom_call.1} parent=11 // pred_check
          %p221 = pneg %p114
        $region18: #{tpu_custom_call.1} parent=11 // pred_check_branch
          %223 = sbr.rel (%p221) target = $region20
        $region19: #{tpu_custom_call.1} parent=11 // pred_region
          %s225 = ssub.s32 6144, 6144
          %226 = vsyncadd [#allocation6], %s225
          %s227 = sshll.u32 [#allocation5], 4
          %s228 = int_to_ptr.vmem [resolvable:$true] %s227
          %233 = dma.hbm_to_vmem [thread:$0]  %s3, 6144, %s228, [#allocation6], 64, 64, 4
        $region20: #{tpu_custom_call.1} parent=11 // pred_fallthru
          _
        // Predicated region
        $region21: #{tpu_custom_call.1} parent=11 // pred_check
          %p234 = pneg %p135
        $region22: #{tpu_custom_call.1} parent=11 // pred_check_branch
          %236 = sbr.rel (%p234) target = $region24
        $region23: #{tpu_custom_call.1} parent=11 // pred_region
          _
        $region24: #{tpu_custom_call.1} parent=11 // pred_fallthru
          _
        // Predicated region
        $region25: #{tpu_custom_call.1} parent=11 // pred_check
          %p237 = pneg %p156
        $region26: #{tpu_custom_call.1} parent=11 // pred_check_branch
          %239 = sbr.rel (%p237) target = $region28
        $region27: #{tpu_custom_call.1} parent=11 // pred_region
          %s241 = ssub.s32 3072, 3072
          %242 = vsyncadd [#allocation6], %s241
          %s243 = sshll.u32 [#allocation7], 4
          %s244 = int_to_ptr.vmem [resolvable:$true] %s243
          %249 = dma.hbm_to_vmem [thread:$0]  %s5, 3072, %s244, [#allocation6], 64, 64, 4
        $region28: #{tpu_custom_call.1} parent=11 // pred_fallthru
          _
        // Predicated region
        $region29: #{tpu_custom_call.1} parent=11 // pred_check
          %p250 = pneg %p177
        $region30: #{tpu_custom_call.1} parent=11 // pred_check_branch
          %252 = sbr.rel (%p250) target = $region32
        $region31: #{tpu_custom_call.1} parent=11 // pred_region
          _
        $region32: #{tpu_custom_call.1} parent=11 // pred_fallthru
          _
      $region12: #{tpu_custom_call.1} parent=5 // pred_fallthru
        _
      %p253 = scmp.lt.s32.totalorder %s20, 2
      // Predicated region
      $region33: #{tpu_custom_call.1} parent=5 // pred_check
        %p254 = pneg %p253
      $region34: #{tpu_custom_call.1} parent=5 // pred_check_branch
        %256 = sbr.rel (%p254) target = $region36
      $region35: #{tpu_custom_call.1} parent=5 // pred_region
        // Predicated region
        $region37: #{tpu_custom_call.1} parent=35 // pred_check
          %p257 = pneg %p40
        $region38: #{tpu_custom_call.1} parent=35 // pred_check_branch
          %259 = sbr.rel (%p257) target = $region40
        $region39: #{tpu_custom_call.1} parent=35 // pred_region
          %s260 = sand.u32 %s30, 1
          %s261 = scalar_lea.sflag [#allocation3], %s260
          %s262 = sand.u32 %s30, 1
          %s263 = smul.addr %s262, 8
          %s264 = scalar_lea.vmem [#allocation2], %s263
          %s266 = ssub.s32 128, 128
          %267 = vsyncadd %s261, %s266
          %s268 = smul.addr %s20, 2
          %s269 = smul.addr %s268, 64
          %s270 = scalar_lea.hbm %s0, %s269
          %s271 = sshll.u32 %s264, 4
          %s272 = int_to_ptr.vmem [resolvable:$true] %s271
          %277 = dma.hbm_to_vmem [thread:$0]  %s270, 128, %s272, %s261, 64, 64, 4
        $region40: #{tpu_custom_call.1} parent=35 // pred_fallthru
          _
        // Predicated region
        $region41: #{tpu_custom_call.1} parent=35 // pred_check
          %p278 = pneg %p66
        $region42: #{tpu_custom_call.1} parent=35 // pred_check_branch
          %280 = sbr.rel (%p278) target = $region44
        $region43: #{tpu_custom_call.1} parent=35 // pred_region
          %p281 = scmp.lt.s32.totalorder %s20, 1
          %s282 = scalar_select %p281, %s20, 1
          %s283 = smul.addr %s282, 4
          %s284 = scalar_lea.vmem %s1, %s283
        $region44: #{tpu_custom_call.1} parent=35 // pred_fallthru
          _
      $region36: #{tpu_custom_call.1} parent=5 // pred_fallthru
        _
      %p285 = scmp.le.s32.totalorder 1, %s20
      %p286 = scmp.lt.s32.totalorder %s20, 3
      %p287 = pnand %p285, %p286
      %p288 = pneg %p287
      // Predicated region
      $region45: #{tpu_custom_call.1} parent=5 // pred_check
        _
      $region46: #{tpu_custom_call.1} parent=5 // pred_check_branch
        %290 = sbr.rel (%p287) target = $region48
      $region47: #{tpu_custom_call.1} parent=5 // pred_region
        %s291 = ssub.s32 %s20, 1
        %s292 = sand.u32 %s33, 1
        %s293 = scalar_lea.sflag [#allocation3], %s292
        %s294 = sand.u32 %s33, 1
        %s295 = smul.addr %s294, 8
        %s296 = scalar_lea.vmem [#allocation2], %s295
        // Predicated region
        $region49: #{tpu_custom_call.1} parent=47 // pred_check
          %p297 = pneg %p46
        $region50: #{tpu_custom_call.1} parent=47 // pred_check_branch
          %299 = sbr.rel (%p297) target = $region52
        $region51: #{tpu_custom_call.1} parent=47 // pred_region
          %300 = dma.done %s293, 128
        $region52: #{tpu_custom_call.1} parent=47 // pred_fallthru
          _
        // Predicated region
        $region53: #{tpu_custom_call.1} parent=47 // pred_check
          %p301 = pneg %p114
        $region54: #{tpu_custom_call.1} parent=47 // pred_check_branch
          %303 = sbr.rel (%p301) target = $region56
        $region55: #{tpu_custom_call.1} parent=47 // pred_region
          %304 = dma.done [#allocation6], 6144
        $region56: #{tpu_custom_call.1} parent=47 // pred_fallthru
          _
        // Predicated region
        $region57: #{tpu_custom_call.1} parent=47 // pred_check
          %p305 = pneg %p156
        $region58: #{tpu_custom_call.1} parent=47 // pred_check_branch
          %307 = sbr.rel (%p305) target = $region60
        $region59: #{tpu_custom_call.1} parent=47 // pred_region
          %308 = dma.done [#allocation6], 3072
        $region60: #{tpu_custom_call.1} parent=47 // pred_fallthru
          _
        %s309 = sand.u32 %s33, 1
        %s310 = scalar_lea.sflag [#allocation3], %s309
        %s311 = sand.u32 %s33, 1
        %s312 = smul.addr %s311, 8
        %s313 = scalar_lea.vmem [#allocation2], %s312
        %p314 = pneg %p46
        %p315 = pneg %p43
        %p316 = scmp.lt.s32.totalorder %s25, 1
        %s317 = scalar_select %p316, %s25, 1
        %s318 = smul.addr %s317, 4
        %s319 = scalar_lea.vmem %s1, %s318
        %p320 = pneg %p72
        %p321 = pneg %p69
        %p322 = pneg %p93
        %p323 = pneg %p90
        %p324 = pneg %p114
        %p325 = pneg %p111
        %p326 = pneg %p135
        %p327 = pneg %p132
        %p328 = pneg %p156
        %p329 = pneg %p153
        %p330 = pneg %p177
        %p331 = pneg %p174
        %p332 = pneg %p203
        %p333 = pneg %p200
        %s334 = sand.u32 %s190, 1
        %s335 = scalar_lea.sflag [#allocation4], %s334
        %s336 = sand.u32 %s190, 1
        %s337 = smul.addr %s336, 16
        %s338 = scalar_lea.vmem [#allocation8], %s337
        %p339 = scmp.lt.s32.totalorder %s25, 1
        %s340 = scalar_select %p339, %s25, 1
        %s341 = smul.addr %s340, 4
        %s342 = scalar_lea.vmem %s1, %s341
        %v344 = vld [vmem:[%s2] sm:$0xf]
        %v345 = vld [vmem:[%s2 + $0x4] sm:$0xf]
        %v346 = vld [vmem:[%s342] sm:$0xf]
        %v349 = vunpack.c.l.b16 %v344
        %v350 = vunpack.c.l.b16 %v345
        %v351 = vpack.c.b16 %v350, %v349
        %vm352 = vcmask 64512
        %v354 = vsel %vm352, %v351, 0
        %vm356 = vcmask 1043456
        %v358 = vsel %vm356, %v346, 0
        %360 = vmatprep.subr.bf16.mxu0 0
        %361 = vmatpush1.bf16.msra.mxu0 %v358
        %362 = vmatprep.subr.bf16.mxu0 0
        %363 = vmatpush1.bf16.msra.mxu0 0
        %364 = vmatprep.subr.bf16.mxu0 0
        %365 = vmatpush1.bf16.msra.mxu0 0
        %366 = vmatprep.subr.bf16.mxu0 0
        %367 = vmatpush1.bf16.msra.mxu0 0
        %368 = vmatprep.subr.bf16.mxu0 0
        %369 = vmatpush1.bf16.msra.mxu0 0
        %370 = vmatprep.subr.bf16.mxu0 0
        %371 = vmatpush1.bf16.msra.mxu0 0
        %372 = vmatprep.subr.bf16.mxu0 0
        %373 = vmatpush1.bf16.msra.mxu0 0
        %374 = vmatprep.subr.bf16.mxu0 0
        %375 = vmatpush1.bf16.msra.mxu0 0
        %376 = vmatprep.subr.bf16.mxu0 0
        %377 = vmatpush1.bf16.msra.mxu0 0
        %378 = vmatprep.subr.bf16.mxu0 0
        %379 = vmatpush1.bf16.msra.mxu0 0
        %380 = vmatprep.subr.bf16.mxu0 0
        %381 = vmatpush1.bf16.msra.mxu0 0
        %382 = vmatprep.subr.bf16.mxu0 0
        %383 = vmatpush1.bf16.msra.mxu0 0
        %384 = vmatprep.subr.bf16.mxu0 0
        %385 = vmatpush1.bf16.msra.mxu0 0
        %386 = vmatprep.subr.bf16.mxu0 0
        %387 = vmatpush1.bf16.msra.mxu0 0
        %388 = vmatprep.subr.bf16.mxu0 0
        %389 = vmatpush1.bf16.msra.mxu0 0
        %390 = vmatprep.subr.bf16.mxu0 0
        %391 = vmatpush1.bf16.msra.mxu0 0
        %392 = vmatprep.mubr.bf16.mxu0 0
        %393 = vmatmul.mubr.bf16.gmra.mrb[0].mxu0 %v354
        %v394 = vpop.f32.mrb[0].mxu0
        %v395 = vadd.f32 0.0, %v394
        %v396 = vpop.f32.mrb[0].mxu0
        %v397 = vpop.f32.mrb[0].mxu0
        %v398 = vadd.f32 0.0, %v397
        %v399 = vpop.f32.mrb[0].mxu0
        %400 = vdwg.mxu0
        %v401 = vld [vmem:[%s296] sm:$0xf]
        %v402 = vld [vmem:[%s296 + $0x4] sm:$0xf]
        %v405 = vunpack.c.l.b16 %v401
        %v406 = vunpack.c.l.b16 %v402
        %v407 = vpack.c.b16 %v406, %v405
        %v409 = vshrl.u32 %v407, 16
        %v411 = vrot.slane %v409, 7
        %v412 = vshll.u32 %v407, 16
        %v414 = vor.u32 %v411, %v412
        %vm417 = vcmask 1040384
        %vm418 = vsmask.f32 256
        %vm419 = vmand %vm417, %vm418
        %v420 = vsel %vm419, 0, %v414
        %v421 = vsel %vm419, %v411, 0
        %v422 = vpack.c.bf16 %v398, %v395
        %v424 = vshrl.u32 %v422, 16
        %v426 = vrot.slane %v424, 7
        %v427 = vshll.u32 %v422, 16
        %v429 = vor.u32 %v426, %v427
        %v432 = vsel %vm419, 0, %v429
        %v433 = vsel %vm419, %v426, 0
        %vm434 = vsmask.f32 7424
        %v436 = vshrl.u32 %v420, 16
        %v438 = vshll.u32 %v420, 16
        %v440 = vrot.slane %v438, 1
        %v441 = vor.u32 %v436, %v440
        %v443 = vshll.u32 %v421, 16
        %v445 = vrot.slane %v443, 1
        %v446 = vsel %vm434, %v441, %v445
        %vm450 = vcmask 1046528
        %v451 = vrot.slane %v420, 1
        %v452 = vrot.slane %v421, 1
        %v453 = vsel %vm450, %v451, %v452
        %v456 = vshrl.u32 %v432, 16
        %v458 = vshll.u32 %v432, 16
        %v460 = vrot.slane %v458, 1
        %v461 = vor.u32 %v456, %v460
        %v463 = vshll.u32 %v433, 16
        %v465 = vrot.slane %v463, 1
        %v466 = vsel %vm434, %v461, %v465
        %v470 = vrot.slane %v432, 1
        %v471 = vrot.slane %v433, 1
        %v472 = vsel %vm450, %v470, %v471
        %v474 = vld [vmem:[#allocation5] sm:$0xf]
        %v475 = vld [vmem:[#allocation5 + $0x4] sm:$0xf]
        %v476 = vld [vmem:[#allocation5 + $0x8] sm:$0xf]
        %v477 = vld [vmem:[#allocation5 + $0xc] sm:$0xf]
        %v478 = vld [vmem:[#allocation5 + $0x10] sm:$0xf]
        %v479 = vld [vmem:[#allocation5 + $0x14] sm:$0xf]
        %v480 = vld [vmem:[#allocation5 + $0x18] sm:$0xf]
        %v481 = vld [vmem:[#allocation5 + $0x1c] sm:$0xf]
        %v482 = vld [vmem:[#allocation5 + $0x20] sm:$0xf]
        %v483 = vld [vmem:[#allocation5 + $0x24] sm:$0xf]
        %v484 = vld [vmem:[#allocation5 + $0x28] sm:$0xf]
        %v485 = vld [vmem:[#allocation5 + $0x2c] sm:$0xf]
        %v486 = vld [vmem:[#allocation5 + $0x30] sm:$0xf]
        %v487 = vld [vmem:[#allocation5 + $0x34] sm:$0xf]
        %v488 = vld [vmem:[#allocation5 + $0x38] sm:$0xf]
        %v489 = vld [vmem:[#allocation5 + $0x3c] sm:$0xf]
        %v490 = vld [vmem:[#allocation5 + $0x40] sm:$0xf]
        %v491 = vld [vmem:[#allocation5 + $0x44] sm:$0xf]
        %v492 = vld [vmem:[#allocation5 + $0x48] sm:$0xf]
        %v493 = vld [vmem:[#allocation5 + $0x4c] sm:$0xf]
        %v494 = vld [vmem:[#allocation5 + $0x50] sm:$0xf]
        %v495 = vld [vmem:[#allocation5 + $0x54] sm:$0xf]
        %v496 = vld [vmem:[#allocation5 + $0x58] sm:$0xf]
        %v497 = vld [vmem:[#allocation5 + $0x5c] sm:$0xf]
        %v498 = vld [vmem:[#allocation5 + $0x60] sm:$0xf]
        %v499 = vld [vmem:[#allocation5 + $0x64] sm:$0xf]
        %v500 = vld [vmem:[#allocation5 + $0x68] sm:$0xf]
        %v501 = vld [vmem:[#allocation5 + $0x6c] sm:$0xf]
        %v502 = vld [vmem:[#allocation5 + $0x70] sm:$0xf]
        %v503 = vld [vmem:[#allocation5 + $0x74] sm:$0xf]
        %v504 = vld [vmem:[#allocation5 + $0x78] sm:$0xf]
        %v505 = vld [vmem:[#allocation5 + $0x7c] sm:$0xf]
        %v506 = vld [vmem:[#allocation5 + $0x80] sm:$0xf]
        %v507 = vld [vmem:[#allocation5 + $0x84] sm:$0xf]
        %v508 = vld [vmem:[#allocation5 + $0x88] sm:$0xf]
        %v509 = vld [vmem:[#allocation5 + $0x8c] sm:$0xf]
        %v510 = vld [vmem:[#allocation5 + $0x90] sm:$0xf]
        %v511 = vld [vmem:[#allocation5 + $0x94] sm:$0xf]
        %v512 = vld [vmem:[#allocation5 + $0x98] sm:$0xf]
        %v513 = vld [vmem:[#allocation5 + $0x9c] sm:$0xf]
        %v514 = vld [vmem:[#allocation5 + $0xa0] sm:$0xf]
        %v515 = vld [vmem:[#allocation5 + $0xa4] sm:$0xf]
        %v516 = vld [vmem:[#allocation5 + $0xa8] sm:$0xf]
        %v517 = vld [vmem:[#allocation5 + $0xac] sm:$0xf]
        %v518 = vld [vmem:[#allocation5 + $0xb0] sm:$0xf]
        %v519 = vld [vmem:[#allocation5 + $0xb4] sm:$0xf]
        %v520 = vld [vmem:[#allocation5 + $0xb8] sm:$0xf]
        %v521 = vld [vmem:[#allocation5 + $0xbc] sm:$0xf]
        %v522 = vld [vmem:[#allocation5 + $0xc0] sm:$0xf]
        %v523 = vld [vmem:[#allocation5 + $0xc4] sm:$0xf]
        %v524 = vld [vmem:[#allocation5 + $0xc8] sm:$0xf]
        %v525 = vld [vmem:[#allocation5 + $0xcc] sm:$0xf]
        %v526 = vld [vmem:[#allocation5 + $0xd0] sm:$0xf]
        %v527 = vld [vmem:[#allocation5 + $0xd4] sm:$0xf]
        %v528 = vld [vmem:[#allocation5 + $0xd8] sm:$0xf]
        %v529 = vld [vmem:[#allocation5 + $0xdc] sm:$0xf]
        %v530 = vld [vmem:[#allocation5 + $0xe0] sm:$0xf]
        %v531 = vld [vmem:[#allocation5 + $0xe4] sm:$0xf]
        %v532 = vld [vmem:[#allocation5 + $0xe8] sm:$0xf]
        %v533 = vld [vmem:[#allocation5 + $0xec] sm:$0xf]
        %v534 = vld [vmem:[#allocation5 + $0xf0] sm:$0xf]
        %v535 = vld [vmem:[#allocation5 + $0xf4] sm:$0xf]
        %v536 = vld [vmem:[#allocation5 + $0xf8] sm:$0xf]
        %v537 = vld [vmem:[#allocation5 + $0xfc] sm:$0xf]
        %v538 = vld [vmem:[#allocation5 + $0x100] sm:$0xf]
        %v539 = vld [vmem:[#allocation5 + $0x104] sm:$0xf]
        %v540 = vld [vmem:[#allocation5 + $0x108] sm:$0xf]
        %v541 = vld [vmem:[#allocation5 + $0x10c] sm:$0xf]
        %v542 = vld [vmem:[#allocation5 + $0x110] sm:$0xf]
        %v543 = vld [vmem:[#allocation5 + $0x114] sm:$0xf]
        %v544 = vld [vmem:[#allocation5 + $0x118] sm:$0xf]
        %v545 = vld [vmem:[#allocation5 + $0x11c] sm:$0xf]
        %v546 = vld [vmem:[#allocation5 + $0x120] sm:$0xf]
        %v547 = vld [vmem:[#allocation5 + $0x124] sm:$0xf]
        %v548 = vld [vmem:[#allocation5 + $0x128] sm:$0xf]
        %v549 = vld [vmem:[#allocation5 + $0x12c] sm:$0xf]
        %v550 = vld [vmem:[#allocation5 + $0x130] sm:$0xf]
        %v551 = vld [vmem:[#allocation5 + $0x134] sm:$0xf]
        %v552 = vld [vmem:[#allocation5 + $0x138] sm:$0xf]
        %v553 = vld [vmem:[#allocation5 + $0x13c] sm:$0xf]
        %v554 = vld [vmem:[#allocation5 + $0x140] sm:$0xf]
        %v555 = vld [vmem:[#allocation5 + $0x144] sm:$0xf]
        %v556 = vld [vmem:[#allocation5 + $0x148] sm:$0xf]
        %v557 = vld [vmem:[#allocation5 + $0x14c] sm:$0xf]
        %v558 = vld [vmem:[#allocation5 + $0x150] sm:$0xf]
        %v559 = vld [vmem:[#allocation5 + $0x154] sm:$0xf]
        %v560 = vld [vmem:[#allocation5 + $0x158] sm:$0xf]
        %v561 = vld [vmem:[#allocation5 + $0x15c] sm:$0xf]
        %v562 = vld [vmem:[#allocation5 + $0x160] sm:$0xf]
        %v563 = vld [vmem:[#allocation5 + $0x164] sm:$0xf]
        %v564 = vld [vmem:[#allocation5 + $0x168] sm:$0xf]
        %v565 = vld [vmem:[#allocation5 + $0x16c] sm:$0xf]
        %v566 = vld [vmem:[#allocation5 + $0x170] sm:$0xf]
        %v567 = vld [vmem:[#allocation5 + $0x174] sm:$0xf]
        %v568 = vld [vmem:[#allocation5 + $0x178] sm:$0xf]
        %v569 = vld [vmem:[#allocation5 + $0x17c] sm:$0xf]
        %v570 = vld [vmem:[%s4] sm:$0x1]
        %v572 = vlaneseq
        %v573 = vshrl.u32 %v572, 7
        %v574 = vsub.s32 0, %v573
        %v575 = vrot.slane %v570, %v574
        %v673 = vunpack.c.l.b16 %v474
        %v674 = vunpack.c.l.b16 %v475
        %v675 = vunpack.c.l.b16 %v476
        %v676 = vunpack.c.l.b16 %v477
        %v677 = vunpack.c.l.b16 %v478
        %v678 = vunpack.c.l.b16 %v479
        %v679 = vunpack.c.l.b16 %v480
        %v680 = vunpack.c.l.b16 %v481
        %v681 = vunpack.c.l.b16 %v482
        %v682 = vunpack.c.l.b16 %v483
        %v683 = vunpack.c.l.b16 %v484
        %v684 = vunpack.c.l.b16 %v485
        %v685 = vunpack.c.l.b16 %v486
        %v686 = vunpack.c.l.b16 %v487
        %v687 = vunpack.c.l.b16 %v488
        %v688 = vunpack.c.l.b16 %v489
        %v689 = vunpack.c.l.b16 %v490
        %v690 = vunpack.c.l.b16 %v491
        %v691 = vunpack.c.l.b16 %v492
        %v692 = vunpack.c.l.b16 %v493
        %v693 = vunpack.c.l.b16 %v494
        %v694 = vunpack.c.l.b16 %v495
        %v695 = vunpack.c.l.b16 %v496
        %v696 = vunpack.c.l.b16 %v497
        %v697 = vunpack.c.l.b16 %v498
        %v698 = vunpack.c.l.b16 %v499
        %v699 = vunpack.c.l.b16 %v500
        %v700 = vunpack.c.l.b16 %v501
        %v701 = vunpack.c.l.b16 %v502
        %v702 = vunpack.c.l.b16 %v503
        %v703 = vunpack.c.l.b16 %v504
        %v704 = vunpack.c.l.b16 %v505
        %v705 = vunpack.c.l.b16 %v506
        %v706 = vunpack.c.l.b16 %v507
        %v707 = vunpack.c.l.b16 %v508
        %v708 = vunpack.c.l.b16 %v509
        %v709 = vunpack.c.l.b16 %v510
        %v710 = vunpack.c.l.b16 %v511
        %v711 = vunpack.c.l.b16 %v512
        %v712 = vunpack.c.l.b16 %v513
        %v713 = vunpack.c.l.b16 %v514
        %v714 = vunpack.c.l.b16 %v515
        %v715 = vunpack.c.l.b16 %v516
        %v716 = vunpack.c.l.b16 %v517
        %v717 = vunpack.c.l.b16 %v518
        %v718 = vunpack.c.l.b16 %v519
        %v719 = vunpack.c.l.b16 %v520
        %v720 = vunpack.c.l.b16 %v521
        %v721 = vunpack.c.l.b16 %v522
        %v722 = vunpack.c.l.b16 %v523
        %v723 = vunpack.c.l.b16 %v524
        %v724 = vunpack.c.l.b16 %v525
        %v725 = vunpack.c.l.b16 %v526
        %v726 = vunpack.c.l.b16 %v527
        %v727 = vunpack.c.l.b16 %v528
        %v728 = vunpack.c.l.b16 %v529
        %v729 = vunpack.c.l.b16 %v530
        %v730 = vunpack.c.l.b16 %v531
        %v731 = vunpack.c.l.b16 %v532
        %v732 = vunpack.c.l.b16 %v533
        %v733 = vunpack.c.l.b16 %v534
        %v734 = vunpack.c.l.b16 %v535
        %v735 = vunpack.c.l.b16 %v536
        %v736 = vunpack.c.l.b16 %v537
        %v737 = vunpack.c.l.b16 %v538
        %v738 = vunpack.c.l.b16 %v539
        %v739 = vunpack.c.l.b16 %v540
        %v740 = vunpack.c.l.b16 %v541
        %v741 = vunpack.c.l.b16 %v542
        %v742 = vunpack.c.l.b16 %v543
        %v743 = vunpack.c.l.b16 %v544
        %v744 = vunpack.c.l.b16 %v545
        %v745 = vunpack.c.l.b16 %v546
        %v746 = vunpack.c.l.b16 %v547
        %v747 = vunpack.c.l.b16 %v548
        %v748 = vunpack.c.l.b16 %v549
        %v749 = vunpack.c.l.b16 %v550
        %v750 = vunpack.c.l.b16 %v551
        %v751 = vunpack.c.l.b16 %v552
        %v752 = vunpack.c.l.b16 %v553
        %v753 = vunpack.c.l.b16 %v554
        %v754 = vunpack.c.l.b16 %v555
        %v755 = vunpack.c.l.b16 %v556
        %v756 = vunpack.c.l.b16 %v557
        %v757 = vunpack.c.l.b16 %v558
        %v758 = vunpack.c.l.b16 %v559
        %v759 = vunpack.c.l.b16 %v560
        %v760 = vunpack.c.l.b16 %v561
        %v761 = vunpack.c.l.b16 %v562
        %v762 = vunpack.c.l.b16 %v563
        %v763 = vunpack.c.l.b16 %v564
        %v764 = vunpack.c.l.b16 %v565
        %v765 = vunpack.c.l.b16 %v566
        %v766 = vunpack.c.l.b16 %v567
        %v767 = vunpack.c.l.b16 %v568
        %v768 = vunpack.c.l.b16 %v569
        %v769 = vpack.c.b16 %v674, %v673
        %v770 = vpack.c.b16 %v676, %v675
        %v771 = vpack.c.b16 %v678, %v677
        %v772 = vpack.c.b16 %v680, %v679
        %v773 = vpack.c.b16 %v682, %v681
        %v774 = vpack.c.b16 %v684, %v683
        %v775 = vpack.c.b16 %v686, %v685
        %v776 = vpack.c.b16 %v688, %v687
        %v777 = vpack.c.b16 %v690, %v689
        %v778 = vpack.c.b16 %v692, %v691
        %v779 = vpack.c.b16 %v694, %v693
        %v780 = vpack.c.b16 %v696, %v695
        %v781 = vpack.c.b16 %v698, %v697
        %v782 = vpack.c.b16 %v700, %v699
        %v783 = vpack.c.b16 %v702, %v701
        %v784 = vpack.c.b16 %v704, %v703
        %v785 = vpack.c.b16 %v706, %v705
        %v786 = vpack.c.b16 %v708, %v707
        %v787 = vpack.c.b16 %v710, %v709
        %v788 = vpack.c.b16 %v712, %v711
        %v789 = vpack.c.b16 %v714, %v713
        %v790 = vpack.c.b16 %v716, %v715
        %v791 = vpack.c.b16 %v718, %v717
        %v792 = vpack.c.b16 %v720, %v719
        %v793 = vpack.c.b16 %v722, %v721
        %v794 = vpack.c.b16 %v724, %v723
        %v795 = vpack.c.b16 %v726, %v725
        %v796 = vpack.c.b16 %v728, %v727
        %v797 = vpack.c.b16 %v730, %v729
        %v798 = vpack.c.b16 %v732, %v731
        %v799 = vpack.c.b16 %v734, %v733
        %v800 = vpack.c.b16 %v736, %v735
        %v801 = vpack.c.b16 %v738, %v737
        %v802 = vpack.c.b16 %v740, %v739
        %v803 = vpack.c.b16 %v742, %v741
        %v804 = vpack.c.b16 %v744, %v743
        %v805 = vpack.c.b16 %v746, %v745
        %v806 = vpack.c.b16 %v748, %v747
        %v807 = vpack.c.b16 %v750, %v749
        %v808 = vpack.c.b16 %v752, %v751
        %v809 = vpack.c.b16 %v754, %v753
        %v810 = vpack.c.b16 %v756, %v755
        %v811 = vpack.c.b16 %v758, %v757
        %v812 = vpack.c.b16 %v760, %v759
        %v813 = vpack.c.b16 %v762, %v761
        %v814 = vpack.c.b16 %v764, %v763
        %v815 = vpack.c.b16 %v766, %v765
        %v816 = vpack.c.b16 %v768, %v767
        %865 = vmatprep.subr.bf16.mxu0 0
        %866 = vmatpush1.bf16.msra.mxu0 %v769
        %867 = vmatprep.subr.bf16.mxu0 0
        %868 = vmatpush1.bf16.msra.mxu0 %v770
        %869 = vmatprep.subr.bf16.mxu0 0
        %870 = vmatpush1.bf16.msra.mxu0 %v771
        %871 = vmatprep.subr.bf16.mxu0 0
        %872 = vmatpush1.bf16.msra.mxu0 %v772
        %873 = vmatprep.subr.bf16.mxu0 0
        %874 = vmatpush1.bf16.msra.mxu0 %v773
        %875 = vmatprep.subr.bf16.mxu0 0
        %876 = vmatpush1.bf16.msra.mxu0 %v774
        %877 = vmatprep.subr.bf16.mxu0 0
        %878 = vmatpush1.bf16.msra.mxu0 %v775
        %879 = vmatprep.subr.bf16.mxu0 0
        %880 = vmatpush1.bf16.msra.mxu0 %v776
        %881 = vmatprep.subr.bf16.mxu0 0
        %882 = vmatpush1.bf16.msra.mxu0 %v777
        %883 = vmatprep.subr.bf16.mxu0 0
        %884 = vmatpush1.bf16.msra.mxu0 %v778
        %885 = vmatprep.subr.bf16.mxu0 0
        %886 = vmatpush1.bf16.msra.mxu0 %v779
        %887 = vmatprep.subr.bf16.mxu0 0
        %888 = vmatpush1.bf16.msra.mxu0 %v780
        %889 = vmatprep.subr.bf16.mxu0 0
        %890 = vmatpush1.bf16.msra.mxu0 %v781
        %891 = vmatprep.subr.bf16.mxu0 0
        %892 = vmatpush1.bf16.msra.mxu0 %v782
        %893 = vmatprep.subr.bf16.mxu0 0
        %894 = vmatpush1.bf16.msra.mxu0 %v783
        %895 = vmatprep.subr.bf16.mxu0 0
        %896 = vmatpush1.bf16.msra.mxu0 %v784
        %897 = vmatprep.mubr.bf16.mxu0 %v446
        %898 = vmatmul.mubr.bf16.gmra.mrb[0].mxu0 %v420
        %v899 = vpop.f32.mrb[0].mxu0
        %v900 = vadd.f32 %v575, %v899
        %v901 = vpop.f32.mrb[0].mxu0
        %v902 = vpop.f32.mrb[0].mxu0
        %v903 = vadd.f32 %v575, %v902
        %v904 = vpop.f32.mrb[0].mxu0
        %905 = vdwg.mxu0
        %906 = vmatprep.subr.bf16.mxu0 0
        %907 = vmatpush1.bf16.msra.mxu0 %v785
        %908 = vmatprep.subr.bf16.mxu0 0
        %909 = vmatpush1.bf16.msra.mxu0 %v786
        %910 = vmatprep.subr.bf16.mxu0 0
        %911 = vmatpush1.bf16.msra.mxu0 %v787
        %912 = vmatprep.subr.bf16.mxu0 0
        %913 = vmatpush1.bf16.msra.mxu0 %v788
        %914 = vmatprep.subr.bf16.mxu0 0
        %915 = vmatpush1.bf16.msra.mxu0 %v789
        %916 = vmatprep.subr.bf16.mxu0 0
        %917 = vmatpush1.bf16.msra.mxu0 %v790
        %918 = vmatprep.subr.bf16.mxu0 0
        %919 = vmatpush1.bf16.msra.mxu0 %v791
        %920 = vmatprep.subr.bf16.mxu0 0
        %921 = vmatpush1.bf16.msra.mxu0 %v792
        %922 = vmatprep.subr.bf16.mxu0 0
        %923 = vmatpush1.bf16.msra.mxu0 %v793
        %924 = vmatprep.subr.bf16.mxu0 0
        %925 = vmatpush1.bf16.msra.mxu0 %v794
        %926 = vmatprep.subr.bf16.mxu0 0
        %927 = vmatpush1.bf16.msra.mxu0 %v795
        %928 = vmatprep.subr.bf16.mxu0 0
        %929 = vmatpush1.bf16.msra.mxu0 %v796
        %930 = vmatprep.subr.bf16.mxu0 0
        %931 = vmatpush1.bf16.msra.mxu0 %v797
        %932 = vmatprep.subr.bf16.mxu0 0
        %933 = vmatpush1.bf16.msra.mxu0 %v798
        %934 = vmatprep.subr.bf16.mxu0 0
        %935 = vmatpush1.bf16.msra.mxu0 %v799
        %936 = vmatprep.subr.bf16.mxu0 0
        %937 = vmatpush1.bf16.msra.mxu0 %v800
        %938 = vmatprep.mubr.bf16.mxu0 %v432
        %939 = vmatmul.mubr.bf16.gmra.mrb[0].mxu0 %v453
        %v940 = vpop.f32.mrb[0].mxu0
        %v941 = vadd.f32 %v900, %v940
        %v942 = vpop.f32.mrb[0].mxu0
        %v943 = vpop.f32.mrb[0].mxu0
        %v944 = vadd.f32 %v903, %v943
        %v945 = vpop.f32.mrb[0].mxu0
        %946 = vdwg.mxu0
        %947 = vmatprep.subr.bf16.mxu0 0
        %948 = vmatpush1.bf16.msra.mxu0 %v801
        %949 = vmatprep.subr.bf16.mxu0 0
        %950 = vmatpush1.bf16.msra.mxu0 %v802
        %951 = vmatprep.subr.bf16.mxu0 0
        %952 = vmatpush1.bf16.msra.mxu0 %v803
        %953 = vmatprep.subr.bf16.mxu0 0
        %954 = vmatpush1.bf16.msra.mxu0 %v804
        %955 = vmatprep.subr.bf16.mxu0 0
        %956 = vmatpush1.bf16.msra.mxu0 %v805
        %957 = vmatprep.subr.bf16.mxu0 0
        %958 = vmatpush1.bf16.msra.mxu0 %v806
        %959 = vmatprep.subr.bf16.mxu0 0
        %960 = vmatpush1.bf16.msra.mxu0 %v807
        %961 = vmatprep.subr.bf16.mxu0 0
        %962 = vmatpush1.bf16.msra.mxu0 %v808
        %963 = vmatprep.subr.bf16.mxu0 0
        %964 = vmatpush1.bf16.msra.mxu0 %v809
        %965 = vmatprep.subr.bf16.mxu0 0
        %966 = vmatpush1.bf16.msra.mxu0 %v810
        %967 = vmatprep.subr.bf16.mxu0 0
        %968 = vmatpush1.bf16.msra.mxu0 %v811
        %969 = vmatprep.subr.bf16.mxu0 0
        %970 = vmatpush1.bf16.msra.mxu0 %v812
        %971 = vmatprep.subr.bf16.mxu0 0
        %972 = vmatpush1.bf16.msra.mxu0 %v813
        %973 = vmatprep.subr.bf16.mxu0 0
        %974 = vmatpush1.bf16.msra.mxu0 %v814
        %975 = vmatprep.subr.bf16.mxu0 0
        %976 = vmatpush1.bf16.msra.mxu0 %v815
        %977 = vmatprep.subr.bf16.mxu0 0
        %978 = vmatpush1.bf16.msra.mxu0 %v816
        %979 = vmatprep.mubr.bf16.mxu0 %v472
        %980 = vmatmul.mubr.bf16.gmra.mrb[0].mxu0 %v466
        %v981 = vpop.f32.mrb[0].mxu0
        %v982 = vadd.f32 %v941, %v981
        %v983 = vpop.f32.mrb[0].mxu0
        %v984 = vpop.f32.mrb[0].mxu0
        %v985 = vadd.f32 %v944, %v984
        %v986 = vpop.f32.mrb[0].mxu0
        %987 = vdwg.mxu0
        %v988 = vmax.f32 %v982, 0.0
        %v989 = vmax.f32 %v985, 0.0
        %v990 = vpack.c.bf16 %v989, %v988
        %v992 = vshrl.u32 %v990, 16
        %v994 = vrot.slane %v992, 7
        %v995 = vshll.u32 %v990, 16
        %v997 = vor.u32 %v994, %v995
        %v1000 = vsel %vm419, 0, %v997
        %v1001 = vsel %vm419, %v994, 0
        %v1003 = vshrl.u32 %v1000, 16
        %v1005 = vshll.u32 %v1000, 16
        %v1007 = vrot.slane %v1005, 1
        %v1008 = vor.u32 %v1003, %v1007
        %v1010 = vshll.u32 %v1001, 16
        %v1012 = vrot.slane %v1010, 1
        %v1013 = vsel %vm434, %v1008, %v1012
        %v1017 = vrot.slane %v1000, 1
        %v1018 = vrot.slane %v1001, 1
        %v1019 = vsel %vm450, %v1017, %v1018
        %v1021 = vld [vmem:[#allocation7] sm:$0xf]
        %v1022 = vld [vmem:[#allocation7 + $0x4] sm:$0xf]
        %v1023 = vld [vmem:[#allocation7 + $0x8] sm:$0xf]
        %v1024 = vld [vmem:[#allocation7 + $0xc] sm:$0xf]
        %v1025 = vld [vmem:[#allocation7 + $0x10] sm:$0xf]
        %v1026 = vld [vmem:[#allocation7 + $0x14] sm:$0xf]
        %v1027 = vld [vmem:[#allocation7 + $0x18] sm:$0xf]
        %v1028 = vld [vmem:[#allocation7 + $0x1c] sm:$0xf]
        %v1029 = vld [vmem:[#allocation7 + $0x20] sm:$0xf]
        %v1030 = vld [vmem:[#allocation7 + $0x24] sm:$0xf]
        %v1031 = vld [vmem:[#allocation7 + $0x28] sm:$0xf]
        %v1032 = vld [vmem:[#allocation7 + $0x2c] sm:$0xf]
        %v1033 = vld [vmem:[#allocation7 + $0x30] sm:$0xf]
        %v1034 = vld [vmem:[#allocation7 + $0x34] sm:$0xf]
        %v1035 = vld [vmem:[#allocation7 + $0x38] sm:$0xf]
        %v1036 = vld [vmem:[#allocation7 + $0x3c] sm:$0xf]
        %v1037 = vld [vmem:[#allocation7 + $0x40] sm:$0xf]
        %v1038 = vld [vmem:[#allocation7 + $0x44] sm:$0xf]
        %v1039 = vld [vmem:[#allocation7 + $0x48] sm:$0xf]
        %v1040 = vld [vmem:[#allocation7 + $0x4c] sm:$0xf]
        %v1041 = vld [vmem:[#allocation7 + $0x50] sm:$0xf]
        %v1042 = vld [vmem:[#allocation7 + $0x54] sm:$0xf]
        %v1043 = vld [vmem:[#allocation7 + $0x58] sm:$0xf]
        %v1044 = vld [vmem:[#allocation7 + $0x5c] sm:$0xf]
        %v1045 = vld [vmem:[#allocation7 + $0x60] sm:$0xf]
        %v1046 = vld [vmem:[#allocation7 + $0x64] sm:$0xf]
        %v1047 = vld [vmem:[#allocation7 + $0x68] sm:$0xf]
        %v1048 = vld [vmem:[#allocation7 + $0x6c] sm:$0xf]
        %v1049 = vld [vmem:[#allocation7 + $0x70] sm:$0xf]
        %v1050 = vld [vmem:[#allocation7 + $0x74] sm:$0xf]
        %v1051 = vld [vmem:[#allocation7 + $0x78] sm:$0xf]
        %v1052 = vld [vmem:[#allocation7 + $0x7c] sm:$0xf]
        %v1053 = vld [vmem:[#allocation7 + $0x80] sm:$0xf]
        %v1054 = vld [vmem:[#allocation7 + $0x84] sm:$0xf]
        %v1055 = vld [vmem:[#allocation7 + $0x88] sm:$0xf]
        %v1056 = vld [vmem:[#allocation7 + $0x8c] sm:$0xf]
        %v1057 = vld [vmem:[#allocation7 + $0x90] sm:$0xf]
        %v1058 = vld [vmem:[#allocation7 + $0x94] sm:$0xf]
        %v1059 = vld [vmem:[#allocation7 + $0x98] sm:$0xf]
        %v1060 = vld [vmem:[#allocation7 + $0x9c] sm:$0xf]
        %v1061 = vld [vmem:[#allocation7 + $0xa0] sm:$0xf]
        %v1062 = vld [vmem:[#allocation7 + $0xa4] sm:$0xf]
        %v1063 = vld [vmem:[#allocation7 + $0xa8] sm:$0xf]
        %v1064 = vld [vmem:[#allocation7 + $0xac] sm:$0xf]
        %v1065 = vld [vmem:[#allocation7 + $0xb0] sm:$0xf]
        %v1066 = vld [vmem:[#allocation7 + $0xb4] sm:$0xf]
        %v1067 = vld [vmem:[#allocation7 + $0xb8] sm:$0xf]
        %v1068 = vld [vmem:[#allocation7 + $0xbc] sm:$0xf]
        %v1069 = vld [vmem:[%s6] sm:$0x1]
        %v1071 = vlaneseq
        %v1072 = vshrl.u32 %v1071, 7
        %v1073 = vsub.s32 0, %v1072
        %v1074 = vrot.slane %v1069, %v1073
        %v1124 = vunpack.c.l.b16 %v1021
        %v1125 = vunpack.c.l.b16 %v1022
        %v1126 = vunpack.c.l.b16 %v1023
        %v1127 = vunpack.c.l.b16 %v1024
        %v1128 = vunpack.c.l.b16 %v1025
        %v1129 = vunpack.c.l.b16 %v1026
        %v1130 = vunpack.c.l.b16 %v1027
        %v1131 = vunpack.c.l.b16 %v1028
        %v1132 = vunpack.c.l.b16 %v1029
        %v1133 = vunpack.c.l.b16 %v1030
        %v1134 = vunpack.c.l.b16 %v1031
        %v1135 = vunpack.c.l.b16 %v1032
        %v1136 = vunpack.c.l.b16 %v1033
        %v1137 = vunpack.c.l.b16 %v1034
        %v1138 = vunpack.c.l.b16 %v1035
        %v1139 = vunpack.c.l.b16 %v1036
        %v1140 = vunpack.c.l.b16 %v1037
        %v1141 = vunpack.c.l.b16 %v1038
        %v1142 = vunpack.c.l.b16 %v1039
        %v1143 = vunpack.c.l.b16 %v1040
        %v1144 = vunpack.c.l.b16 %v1041
        %v1145 = vunpack.c.l.b16 %v1042
        %v1146 = vunpack.c.l.b16 %v1043
        %v1147 = vunpack.c.l.b16 %v1044
        %v1148 = vunpack.c.l.b16 %v1045
        %v1149 = vunpack.c.l.b16 %v1046
        %v1150 = vunpack.c.l.b16 %v1047
        %v1151 = vunpack.c.l.b16 %v1048
        %v1152 = vunpack.c.l.b16 %v1049
        %v1153 = vunpack.c.l.b16 %v1050
        %v1154 = vunpack.c.l.b16 %v1051
        %v1155 = vunpack.c.l.b16 %v1052
        %v1156 = vunpack.c.l.b16 %v1053
        %v1157 = vunpack.c.l.b16 %v1054
        %v1158 = vunpack.c.l.b16 %v1055
        %v1159 = vunpack.c.l.b16 %v1056
        %v1160 = vunpack.c.l.b16 %v1057
        %v1161 = vunpack.c.l.b16 %v1058
        %v1162 = vunpack.c.l.b16 %v1059
        %v1163 = vunpack.c.l.b16 %v1060
        %v1164 = vunpack.c.l.b16 %v1061
        %v1165 = vunpack.c.l.b16 %v1062
        %v1166 = vunpack.c.l.b16 %v1063
        %v1167 = vunpack.c.l.b16 %v1064
        %v1168 = vunpack.c.l.b16 %v1065
        %v1169 = vunpack.c.l.b16 %v1066
        %v1170 = vunpack.c.l.b16 %v1067
        %v1171 = vunpack.c.l.b16 %v1068
        %v1172 = vpack.c.b16 %v1125, %v1124
        %v1173 = vpack.c.b16 %v1127, %v1126
        %v1174 = vpack.c.b16 %v1129, %v1128
        %v1175 = vpack.c.b16 %v1131, %v1130
        %v1176 = vpack.c.b16 %v1133, %v1132
        %v1177 = vpack.c.b16 %v1135, %v1134
        %v1178 = vpack.c.b16 %v1137, %v1136
        %v1179 = vpack.c.b16 %v1139, %v1138
        %v1180 = vpack.c.b16 %v1141, %v1140
        %v1181 = vpack.c.b16 %v1143, %v1142
        %v1182 = vpack.c.b16 %v1145, %v1144
        %v1183 = vpack.c.b16 %v1147, %v1146
        %v1184 = vpack.c.b16 %v1149, %v1148
        %v1185 = vpack.c.b16 %v1151, %v1150
        %v1186 = vpack.c.b16 %v1153, %v1152
        %v1187 = vpack.c.b16 %v1155, %v1154
        %v1188 = vpack.c.b16 %v1157, %v1156
        %v1189 = vpack.c.b16 %v1159, %v1158
        %v1190 = vpack.c.b16 %v1161, %v1160
        %v1191 = vpack.c.b16 %v1163, %v1162
        %v1192 = vpack.c.b16 %v1165, %v1164
        %v1193 = vpack.c.b16 %v1167, %v1166
        %v1194 = vpack.c.b16 %v1169, %v1168
        %v1195 = vpack.c.b16 %v1171, %v1170
        %1220 = vmatprep.subr.bf16.mxu0 0
        %1221 = vmatpush1.bf16.msra.mxu0 %v1172
        %1222 = vmatprep.subr.bf16.mxu0 0
        %1223 = vmatpush1.bf16.msra.mxu0 %v1173
        %1224 = vmatprep.subr.bf16.mxu0 0
        %1225 = vmatpush1.bf16.msra.mxu0 %v1174
        %1226 = vmatprep.subr.bf16.mxu0 0
        %1227 = vmatpush1.bf16.msra.mxu0 %v1175
        %1228 = vmatprep.subr.bf16.mxu0 0
        %1229 = vmatpush1.bf16.msra.mxu0 %v1176
        %1230 = vmatprep.subr.bf16.mxu0 0
        %1231 = vmatpush1.bf16.msra.mxu0 %v1177
        %1232 = vmatprep.subr.bf16.mxu0 0
        %1233 = vmatpush1.bf16.msra.mxu0 %v1178
        %1234 = vmatprep.subr.bf16.mxu0 0
        %1235 = vmatpush1.bf16.msra.mxu0 %v1179
        %1236 = vmatprep.subr.bf16.mxu0 0
        %1237 = vmatpush1.bf16.msra.mxu0 %v1180
        %1238 = vmatprep.subr.bf16.mxu0 0
        %1239 = vmatpush1.bf16.msra.mxu0 %v1181
        %1240 = vmatprep.subr.bf16.mxu0 0
        %1241 = vmatpush1.bf16.msra.mxu0 %v1182
        %1242 = vmatprep.subr.bf16.mxu0 0
        %1243 = vmatpush1.bf16.msra.mxu0 %v1183
        %1244 = vmatprep.subr.bf16.mxu0 0
        %1245 = vmatpush1.bf16.msra.mxu0 %v1184
        %1246 = vmatprep.subr.bf16.mxu0 0
        %1247 = vmatpush1.bf16.msra.mxu0 %v1185
        %1248 = vmatprep.subr.bf16.mxu0 0
        %1249 = vmatpush1.bf16.msra.mxu0 %v1186
        %1250 = vmatprep.subr.bf16.mxu0 0
        %1251 = vmatpush1.bf16.msra.mxu0 %v1187
        %1252 = vmatprep.mubr.bf16.mxu0 %v1013
        %1253 = vmatmul.mubr.bf16.gmra.mrb[0].mxu0 %v1000
        %v1254 = vpop.f32.mrb[0].mxu0
        %v1255 = vadd.f32 %v1074, %v1254
        %v1256 = vpop.f32.mrb[0].mxu0
        %v1257 = vpop.f32.mrb[0].mxu0
        %v1258 = vadd.f32 %v1074, %v1257
        %v1259 = vpop.f32.mrb[0].mxu0
        %1260 = vdwg.mxu0
        %1261 = vmatprep.subr.bf16.mxu0 0
        %1262 = vmatpush1.bf16.msra.mxu0 %v1188
        %1263 = vmatprep.subr.bf16.mxu0 0
        %1264 = vmatpush1.bf16.msra.mxu0 %v1189
        %1265 = vmatprep.subr.bf16.mxu0 0
        %1266 = vmatpush1.bf16.msra.mxu0 %v1190
        %1267 = vmatprep.subr.bf16.mxu0 0
        %1268 = vmatpush1.bf16.msra.mxu0 %v1191
        %1269 = vmatprep.subr.bf16.mxu0 0
        %1270 = vmatpush1.bf16.msra.mxu0 %v1192
        %1271 = vmatprep.subr.bf16.mxu0 0
        %1272 = vmatpush1.bf16.msra.mxu0 %v1193
        %1273 = vmatprep.subr.bf16.mxu0 0
        %1274 = vmatpush1.bf16.msra.mxu0 %v1194
        %1275 = vmatprep.subr.bf16.mxu0 0
        %1276 = vmatpush1.bf16.msra.mxu0 %v1195
        %1277 = vmatprep.subr.bf16.mxu0 0
        %1278 = vmatpush1.bf16.msra.mxu0 0
        %1279 = vmatprep.subr.bf16.mxu0 0
        %1280 = vmatpush1.bf16.msra.mxu0 0
        %1281 = vmatprep.subr.bf16.mxu0 0
        %1282 = vmatpush1.bf16.msra.mxu0 0
        %1283 = vmatprep.subr.bf16.mxu0 0
        %1284 = vmatpush1.bf16.msra.mxu0 0
        %1285 = vmatprep.subr.bf16.mxu0 0
        %1286 = vmatpush1.bf16.msra.mxu0 0
        %1287 = vmatprep.subr.bf16.mxu0 0
        %1288 = vmatpush1.bf16.msra.mxu0 0
        %1289 = vmatprep.subr.bf16.mxu0 0
        %1290 = vmatpush1.bf16.msra.mxu0 0
        %1291 = vmatprep.subr.bf16.mxu0 0
        %1292 = vmatpush1.bf16.msra.mxu0 0
        %1293 = vmatprep.mubr.bf16.mxu0 0
        %1294 = vmatmul.mubr.bf16.gmra.mrb[0].mxu0 %v1019
        %v1295 = vpop.f32.mrb[0].mxu0
        %v1296 = vadd.f32 %v1255, %v1295
        %v1297 = vpop.f32.mrb[0].mxu0
        %v1298 = vpop.f32.mrb[0].mxu0
        %v1299 = vadd.f32 %v1258, %v1298
        %v1300 = vpop.f32.mrb[0].mxu0
        %1301 = vdwg.mxu0
        %v1302 = vmax.f32 %v1296, 0.0
        %v1303 = vmax.f32 %v1299, 0.0
        %1304 = vst [vmem:[%s338] sm:$0xff] %v1302
        %1305 = vst [vmem:[%s338 + $0x8] sm:$0xff] %v1303
        %s1306 = sand.u32 %s190, 1
        %s1307 = scalar_lea.sflag [#allocation4], %s1306
        %s1308 = sand.u32 %s190, 1
        %s1309 = smul.addr %s1308, 16
        %s1310 = scalar_lea.vmem [#allocation8], %s1309
        // Predicated region
        $region61: #{tpu_custom_call.1} parent=47 // pred_check
          %p1311 = pneg %p200
        $region62: #{tpu_custom_call.1} parent=47 // pred_check_branch
          %1313 = sbr.rel (%p1311) target = $region64
        $region63: #{tpu_custom_call.1} parent=47 // pred_region
          %s1315 = ssub.s32 256, 256
          %1316 = vsyncadd %s1307, %s1315
          %s1317 = smul.addr %s25, 2
          %s1318 = smul.addr %s1317, 128
          %s1319 = scalar_lea.hbm %s7, %s1318
          %s1320 = sshll.u32 %s1310, 4
          %s1321 = int_to_ptr.vmem [resolvable:$true] %s1320
          %1326 = dma.vmem_to_hbm [thread:$0]  %s1321, 256, %s1319, %s1307, 128, 128, 8
        $region64: #{tpu_custom_call.1} parent=47 // pred_fallthru
          _
      $region48: #{tpu_custom_call.1} parent=5 // pred_fallthru
        _
      %p1327 = scmp.le.s32.totalorder 2, %s20
      // Predicated region
      $region65: #{tpu_custom_call.1} parent=5 // pred_check
        %p1328 = pneg %p1327
      $region66: #{tpu_custom_call.1} parent=5 // pred_check_branch
        %1330 = sbr.rel (%p1328) target = $region68
      $region67: #{tpu_custom_call.1} parent=5 // pred_region
        %s1331 = ssub.s32 %s20, 2
        // Predicated region
        $region69: #{tpu_custom_call.1} parent=67 // pred_check
          %p1332 = pneg %p206
        $region70: #{tpu_custom_call.1} parent=67 // pred_check_branch
          %1334 = sbr.rel (%p1332) target = $region72
        $region71: #{tpu_custom_call.1} parent=67 // pred_region
          %s1335 = sand.u32 %s191, 1
          %s1336 = scalar_lea.sflag [#allocation4], %s1335
          %s1337 = sand.u32 %s191, 1
          %s1338 = smul.addr %s1337, 16
          %s1339 = scalar_lea.vmem [#allocation8], %s1338
          %1340 = dma.done %s1336, 256
        $region72: #{tpu_custom_call.1} parent=67 // pred_fallthru
          _
      $region68: #{tpu_custom_call.1} parent=5 // pred_fallthru
        _
    $region6: #{tpu_custom_call.1} parent=1 // loop_footer
      %s24 = sadd.s32 1, %s20
    $region7: #{tpu_custom_call.1} parent=1 // loop_footer_branch
      %19 = sbr.rel target = $region3
    $region8: #{tpu_custom_call.1} parent=1 // loop_exit
      _
    %1341 = vsyncpa [#allocation3], 1
    %s1342 = scalar_lea.sflag [#allocation3], 1
    %1343 = vsyncpa %s1342, 1
    %1344 = vsyncpa [#allocation6], 1
    %1345 = vsyncpa [#allocation4], 1
    %s1346 = scalar_lea.sflag [#allocation4], 1
    %1347 = vsyncpa %s1346, 1

</llo_original>
